<compile_context>
chip_gen: v5e
topology: v5e:2x2
jax: 0.10.0
libtpu: 0.0.40
codegen_flags: <defaults>
</compile_context>

<pallas_src>
import jax
import jax.numpy as jnp
from jax.experimental import pallas as pl
from jax.experimental.pallas import tpu as pltpu


# ---------------------------------------------------------------------------
# Fused Pallas kernel: embed + bi-LSTM step + attention + output head (VMEM resident).
# ---------------------------------------------------------------------------
def decoder_kernel(ids_ref, emb_ref, wg_ref, bg_ref, h0_ref, c0_ref,
                   enc_ref, ws_ref, bs_ref, wc_ref, bc_ref, wo_ref, bo_ref,
                   pred_ref, hn_ref, cn_ref):
    D, B, H = h0_ref.shape
    V = emb_ref.shape[0]
    TB = ids_ref.shape[0]
    T = TB // B
    SB, HD = enc_ref.shape

    f32 = jnp.float32
    bf16 = jnp.bfloat16

    # ---- embedding lookup as a one-hot MXU matmul (token ids live in SMEM) ----
    iota_v = jax.lax.broadcasted_iota(jnp.int32, (1, V), 1)
    emb_bf = emb_ref[...]                                            # (V, H) bf16

    def embed(t):
        rows = [(iota_v == ids_ref[t * B + b]).astype(f32) for b in range(B)]
        onehot = jnp.concatenate(rows, axis=0).astype(bf16)          # (B, V)
        return jnp.dot(onehot, emb_bf,
                       preferred_element_type=f32).astype(bf16)      # (B, H)

    xs = [embed(t) for t in range(T)]
    # TODO(synk): nn.Dropout on the embedding is a stochastic train-time op; identity (eval) here.

    # ---- fused bidirectional LSTM: both directions' 8 gate groups in ONE matmul ----
    # state layout: [h_fwd | h_bwd] (B, 2H); gate columns [i_f,i_b,f_f,f_b,g_f,g_b,o_f,o_b].
    h = jnp.concatenate([h0_ref[0], h0_ref[1]], axis=1)              # (B, 2H) f32
    c = jnp.concatenate([c0_ref[0], c0_ref[1]], axis=1)              # (B, 2H) f32
    wg = wg_ref[...]                                                 # (4H, 8H) bf16
    bg = bg_ref[...]                                                 # (1, 8H) f32
    lane = jax.lax.broadcasted_iota(jnp.int32, (B, 8 * H), 1)
    is_g = (lane >= 4 * H) & (lane < 6 * H)                          # tanh lanes

    # TODO(synk): switch to lax.fori_loop(..., unroll=True) if T grows beyond a few steps.
    for s in range(T):
        x4 = jnp.concatenate([xs[s], xs[T - 1 - s], h.astype(bf16)], axis=1)  # (B, 4H)
        gates = jnp.dot(x4, wg, preferred_element_type=f32) + bg              # (B, 8H)
        act = jnp.where(is_g, jnp.tanh(gates), jax.nn.sigmoid(gates))         # full-vreg EUP
        i_g = act[:, 0:2 * H]
        f_g = act[:, 2 * H:4 * H]
        g_g = act[:, 4 * H:6 * H]
        o_g = act[:, 6 * H:8 * H]
        c = f_g * c + i_g * g_g
        h = o_g * jnp.tanh(c)

    hn_ref[0] = h[:, 0:H]
    hn_ref[1] = h[:, H:2 * H]
    cn_ref[0] = c[:, 0:H]
    cn_ref[1] = c[:, H:2 * H]

    # ---- attention (vectorized over batch) ----
    # enc rows are (s, b) flattened as r = s*B + b; the torch interleave of top_hidden
    # is folded into ws / wc at prepare time, so top is just [h_fwd | h_bwd].
    top_bf = h.astype(bf16)                                          # (B, HD)
    enc = enc_ref[...]                                               # (S*B, HD) f32
    enc_bf = enc.astype(bf16)

    prep = jnp.dot(enc_bf, ws_ref[...],
                   preferred_element_type=f32) + bs_ref[...]         # (S*B, HD)
    scores = jax.lax.dot_general(top_bf, prep.astype(bf16),
                                 (((1,), (1,)), ((), ())),
                                 preferred_element_type=f32)         # (B, S*B)
    row_id = jax.lax.broadcasted_iota(jnp.int32, (B, SB), 0)
    col_id = jax.lax.broadcasted_iota(jnp.int32, (B, SB), 1)
    own = (col_id % B) == row_id                                     # block-diagonal mask
    masked = jnp.where(own, scores, jnp.full_like(scores, -1e30))
    m = jnp.max(masked, axis=1, keepdims=True)
    e = jnp.exp(masked - m)
    attn = e * pl.reciprocal(jnp.sum(e, axis=1, keepdims=True), approx=True)  # (B, S*B)

    con = jnp.dot(attn.astype(bf16), enc_bf, preferred_element_type=f32)      # (B, HD)

    # ---- context combiner (single fused matmul) + output head ----
    cat = jnp.concatenate([con.astype(bf16), top_bf], axis=1)        # (B, 2HD)
    h_tilde = jnp.tanh(jnp.dot(cat, wc_ref[...],
                               preferred_element_type=f32) + bc_ref[...])      # (B, H)
    logits = jnp.dot(h_tilde.astype(bf16), wo_ref[...],
                     preferred_element_type=f32) + bo_ref[...]                 # (B, V)

    mx = jnp.max(logits, axis=1, keepdims=True)
    sh = logits - mx
    pred_ref[...] = sh - jnp.log(jnp.sum(jnp.exp(sh), axis=1, keepdims=True))


# ---------------------------------------------------------------------------
# One-time parameter layout prep (hoisted OUT of the per-decode-step path).
# ---------------------------------------------------------------------------
def prepare_decoder_params(params):
    H = params["emb"].shape[1]
    D = 2
    HD = H * D
    V = params["w_out"].shape[0]
    f32, bf16 = jnp.float32, jnp.bfloat16

    # Fused bidirectional gate weight:
    #   rows  = [x_fwd | x_bwd | h_fwd | h_bwd]                (4H)
    #   cols  = [i_f, i_b, f_f, f_b, g_f, g_b, o_f, o_b]       (8H)
    wg = jnp.zeros((4 * H, 8 * H), f32)
    bg = jnp.zeros((8 * H,), f32)
    b_sum = params["b_ih"] + params["b_hh"]                          # (D, 4H)
    for gi in range(4):                                              # PyTorch gate order i,f,g,o
        rsl = slice(gi * H, (gi + 1) * H)
        for d in range(D):
            csl = slice((2 * gi + d) * H, (2 * gi + d + 1) * H)
            wg = wg.at[d * H:(d + 1) * H, csl].set(params["w_ih"][d][rsl, :].T)
            wg = wg.at[(2 + d) * H:(3 + d) * H, csl].set(params["w_hh"][d][rsl, :].T)
            bg = bg.at[csl].set(b_sum[d][rsl])

    # Fold the torch interleave (index h*D + d) of top_hidden into w_score / w_comb
    # so the kernel can use a plain direction-major [h_fwd | h_bwd] state.
    idx = jnp.arange(HD)
    perm = (idx % H) * D + (idx // H)
    ws = params["w_score"][perm, :].T                                # (HD, HD)
    bs = params["b_score"][perm].reshape(1, HD)
    wc = jnp.concatenate([params["w_comb"][:, :HD].T,
                          params["w_comb"][:, HD:][:, perm].T], axis=0)  # (2HD, H)
    bc = params["b_comb"].reshape(1, H)
    wo = params["w_out"].T                                           # (H, V)
    bo = params["b_out"].reshape(1, V)

    return {
        "emb": params["emb"].astype(bf16),
        "wg": wg.astype(bf16), "bg": bg.reshape(1, 8 * H).astype(f32),
        "ws": ws.astype(bf16), "bs": bs.astype(f32),
        "wc": wc.astype(bf16), "bc": bc.astype(f32),
        "wo": wo.astype(bf16), "bo": bo.astype(f32),
    }


# ---------------------------------------------------------------------------
# Per-step wrapper: two free reshapes + one pallas_call.
# ---------------------------------------------------------------------------
@jax.jit
def decoder_forward(prepared, input_data, h_hidden, c_hidden, encoder_hiddens):
    T, B = input_data.shape
    D, _, H = h_hidden.shape
    HD = D * H
    S = encoder_hiddens.shape[0]
    V = prepared["bo"].shape[1]

    ids = input_data.reshape(T * B).astype(jnp.int32)                # -> SMEM
    enc2d = encoder_hiddens.reshape(S * B, HD)                       # free (contiguous) reshape

    flops = (2 * T * B * (V * H + 4 * H * 8 * H)
             + 2 * S * B * HD * HD + 4 * B * S * B * HD
             + 2 * B * 2 * HD * H + 2 * B * H * V)
    transc = T * B * 16 * H + B * S * B + B * (H + V)
    nbytes = (ids.size * 4 + enc2d.size * 4 + h_hidden.size * 4 + c_hidden.size * 4
              + sum(int(v.size) * v.dtype.itemsize for v in prepared.values())
              + B * V * 4 + 2 * D * B * H * 4)

    smem = pl.BlockSpec(memory_space=pltpu.MemorySpace.SMEM)
    vmem = pl.BlockSpec(memory_space=pltpu.MemorySpace.VMEM)

    pred, h_n, c_n = pl.pallas_call(
        decoder_kernel,
        out_shape=(jax.ShapeDtypeStruct((B, V), jnp.float32),
                   jax.ShapeDtypeStruct((D, B, H), jnp.float32),
                   jax.ShapeDtypeStruct((D, B, H), jnp.float32)),
        in_specs=[smem] + [vmem] * 12,
        out_specs=(vmem, vmem, vmem),
        cost_estimate=pl.CostEstimate(flops=flops, transcendentals=transc,
                                      bytes_accessed=nbytes),
    )(ids, prepared["emb"], prepared["wg"], prepared["bg"],
      h_hidden, c_hidden, enc2d,
      prepared["ws"], prepared["bs"], prepared["wc"], prepared["bc"],
      prepared["wo"], prepared["bo"])

    # PyTorch forward returns (pred, (h_n, c_n))
    return pred, (h_n, c_n)


# ---------------------------------------------------------------------------
# Deterministic parameter init (shapes match the nn.Module __init__).
# ---------------------------------------------------------------------------
def init_params(key, hidden_size, output_size, directions=2):
    H, V, D = hidden_size, output_size, directions
    ks = jax.random.split(key, 11)
    b_lstm = 1.0 / (H ** 0.5)
    b_sc = 1.0 / ((H * D) ** 0.5)
    b_cb = 1.0 / ((2 * H * D) ** 0.5)

    def u(k, shape, bound):
        return jax.random.uniform(k, shape, jnp.float32, -bound, bound)

    return {
        "emb": jax.random.normal(ks[0], (V, H), jnp.float32),
        "w_ih": u(ks[1], (D, 4 * H, H), b_lstm),
        "w_hh": u(ks[2], (D, 4 * H, H), b_lstm),
        "b_ih": u(ks[3], (D, 4 * H), b_lstm),
        "b_hh": u(ks[4], (D, 4 * H), b_lstm),
        "w_score": u(ks[5], (H * D, H * D), b_sc),
        "b_score": u(ks[6], (H * D,), b_sc),
        "w_comb": u(ks[7], (H, 2 * H * D), b_cb),
        "b_comb": u(ks[8], (H,), b_cb),
        "w_out": u(ks[9], (V, H), b_lstm),
        "b_out": u(ks[10], (V,), b_lstm),
    }


# ---------------------------------------------------------------------------
# Pure-JAX f32 reference mirroring the PyTorch forward (correctness check).
# ---------------------------------------------------------------------------
def decoder_reference(params, input_data, h0, c0, encoder_hiddens):
    T, B = input_data.shape
    H = params["emb"].shape[1]
    D = 2
    emb = params["emb"][input_data]                                  # (T, B, H)
    hs, cs = [], []
    for d in range(D):
        Wih, Whh = params["w_ih"][d], params["w_hh"][d]
        bih, bhh = params["b_ih"][d], params["b_hh"][d]
        h, c = h0[d], c0[d]
        order = range(T - 1, -1, -1) if d == 1 else range(T)
        for t in order:
            g = emb[t] @ Wih.T + bih + h @ Whh.T + bhh
            i = jax.nn.sigmoid(g[:, :H]); f = jax.nn.sigmoid(g[:, H:2 * H])
            gg = jnp.tanh(g[:, 2 * H:3 * H]); o = jax.nn.sigmoid(g[:, 3 * H:])
            c = f * c + i * gg
            h = o * jnp.tanh(c)
        hs.append(h); cs.append(c)
    h_n = jnp.stack(hs); c_n = jnp.stack(cs)
    top = jnp.transpose(h_n, (1, 2, 0)).reshape(B, H * D)            # torch interleave
    enc_bt = jnp.transpose(encoder_hiddens, (1, 0, 2))               # (B, S, HD)
    prep = enc_bt @ params["w_score"].T + params["b_score"]
    scores = jnp.einsum("bsk,bk->bs", prep, top)
    attn = jax.nn.softmax(scores, axis=1)
    con = jnp.einsum("bsj,bs->bj", enc_bt, attn)
    cat = jnp.concatenate([con, top], axis=1)
    h_tilde = jnp.tanh(cat @ params["w_comb"].T + params["b_comb"])
    logits = h_tilde @ params["w_out"].T + params["b_out"]
    return jax.nn.log_softmax(logits, axis=1), (h_n, c_n)


if __name__ == "__main__":
    H, V = 32, 48            # hidden_size, output_size (vocab)
    T, B, S, D = 1, 4, 8, 2  # decoder step length, batch, encoder length, directions

    key = jax.random.PRNGKey(0)
    kp, k1, k2, k3, k4 = jax.random.split(key, 5)
    params = init_params(kp, H, V, D)
    prepared = prepare_decoder_params(params)        # one-time, outside the decode hot path

    input_data = jax.random.randint(k1, (T, B), 0, V)
    h_hidden = jax.random.normal(k2, (D, B, H), jnp.float32) * 0.5
    c_hidden = jax.random.normal(k3, (D, B, H), jnp.float32) * 0.5
    encoder_hiddens = jax.random.normal(k4, (S, B, H * D), jnp.float32) * 0.5

    pred, (h_n, c_n) = jax.block_until_ready(
        decoder_forward(prepared, input_data, h_hidden, c_hidden, encoder_hiddens))
    pred_r, (hn_r, cn_r) = decoder_reference(
        params, input_data, h_hidden, c_hidden, encoder_hiddens)

    assert pred.shape == (B, V) and h_n.shape == (D, B, H) and c_n.shape == (D, B, H)
    # bf16 MXU operands + f32 accumulation vs pure-f32 reference: 2e-2 tolerance.
    assert jnp.allclose(pred, pred_r, atol=2e-2, rtol=2e-2), \
        float(jnp.max(jnp.abs(pred - pred_r)))
    assert jnp.allclose(h_n, hn_r, atol=2e-2, rtol=2e-2)
    assert jnp.allclose(c_n, cn_r, atol=2e-2, rtol=2e-2)
    # log-softmax rows must exponentiate to probability simplices
    assert jnp.allclose(jnp.sum(jnp.exp(pred), axis=1), jnp.ones((B,)), atol=1e-3)

    print("KERNEL_OK")
</pallas_src>

<mosaic_0001>
module attributes {stable_mosaic.version = 11 : i64} {
  func.func @decoder_kernel(%arg0: memref<4xi32, #tpu.memory_space<smem>>, %arg1: memref<48x32xbf16, #tpu.memory_space<vmem>>, %arg2: memref<128x256xbf16, #tpu.memory_space<vmem>>, %arg3: memref<1x256xf32, #tpu.memory_space<vmem>>, %arg4: memref<2x4x32xf32, #tpu.memory_space<vmem>>, %arg5: memref<2x4x32xf32, #tpu.memory_space<vmem>>, %arg6: memref<32x64xf32, #tpu.memory_space<vmem>>, %arg7: memref<64x64xbf16, #tpu.memory_space<vmem>>, %arg8: memref<1x64xf32, #tpu.memory_space<vmem>>, %arg9: memref<128x32xbf16, #tpu.memory_space<vmem>>, %arg10: memref<1x32xf32, #tpu.memory_space<vmem>>, %arg11: memref<32x48xbf16, #tpu.memory_space<vmem>>, %arg12: memref<1x48xf32, #tpu.memory_space<vmem>>, %arg13: memref<4x48xf32, #tpu.memory_space<vmem>>, %arg14: memref<2x4x32xf32, #tpu.memory_space<vmem>>, %arg15: memref<2x4x32xf32, #tpu.memory_space<vmem>>) attributes {dimension_semantics = [], scalar_prefetch = 0 : i64, scratch_operands = 0 : i64, tpu.core_type = #tpu.core_type<tc>} {
    %0 = tpu.iota {dimensions = array<i32: 1>} : vector<1x48xi32>
    %c0 = arith.constant 0 : index
    %c0_0 = arith.constant 0 : index
    %1 = vector.load %arg1[%c0, %c0_0] : memref<48x32xbf16, #tpu.memory_space<vmem>>, vector<48x32xbf16>
    %c0_1 = arith.constant 0 : index
    %2 = memref.load %arg0[%c0_1] : memref<4xi32, #tpu.memory_space<smem>>
    %3 = vector.broadcast %2 : i32 to vector<1x48xi32>
    %4 = arith.cmpi eq, %0, %3 : vector<1x48xi32>
    %5 = arith.extui %4 : vector<1x48xi1> to vector<1x48xi32>
    %6 = arith.sitofp %5 : vector<1x48xi32> to vector<1x48xf32>
    %c1 = arith.constant 1 : index
    %7 = memref.load %arg0[%c1] : memref<4xi32, #tpu.memory_space<smem>>
    %8 = vector.broadcast %7 : i32 to vector<1x48xi32>
    %9 = arith.cmpi eq, %0, %8 : vector<1x48xi32>
    %10 = arith.extui %9 : vector<1x48xi1> to vector<1x48xi32>
    %11 = arith.sitofp %10 : vector<1x48xi32> to vector<1x48xf32>
    %c2 = arith.constant 2 : index
    %12 = memref.load %arg0[%c2] : memref<4xi32, #tpu.memory_space<smem>>
    %13 = vector.broadcast %12 : i32 to vector<1x48xi32>
    %14 = arith.cmpi eq, %0, %13 : vector<1x48xi32>
    %15 = arith.extui %14 : vector<1x48xi1> to vector<1x48xi32>
    %16 = arith.sitofp %15 : vector<1x48xi32> to vector<1x48xf32>
    %c3 = arith.constant 3 : index
    %17 = memref.load %arg0[%c3] : memref<4xi32, #tpu.memory_space<smem>>
    %18 = vector.broadcast %17 : i32 to vector<1x48xi32>
    %19 = arith.cmpi eq, %0, %18 : vector<1x48xi32>
    %20 = arith.extui %19 : vector<1x48xi1> to vector<1x48xi32>
    %21 = arith.sitofp %20 : vector<1x48xi32> to vector<1x48xf32>
    %22 = tpu.concatenate %6, %11, %16, %21 in 0 : vector<1x48xf32>, vector<1x48xf32>, vector<1x48xf32>, vector<1x48xf32> -> vector<4x48xf32>
    %23 = arith.truncf %22 : vector<4x48xf32> to vector<4x48xbf16>
    %cst = arith.constant dense<0.000000e+00> : vector<4x32xf32>
    %24 = tpu.matmul %23, %1, %cst {dimension_numbers = #tpu.dot_dimension_numbers<[1], [0], [0], [1], [0, 0, 1, 1], [], []>} : vector<4x48xbf16>, vector<48x32xbf16>, vector<4x32xf32> -> vector<4x32xf32>
    %25 = arith.truncf %24 : vector<4x32xf32> to vector<4x32xbf16>
    %c0_2 = arith.constant 0 : index
    %c0_3 = arith.constant 0 : index
    %c0_4 = arith.constant 0 : index
    %26 = vector.load %arg4[%c0_2, %c0_3, %c0_4] : memref<2x4x32xf32, #tpu.memory_space<vmem>>, vector<1x4x32xf32>
    %27 = vector.shape_cast %26 : vector<1x4x32xf32> to vector<4x32xf32>
    %c1_5 = arith.constant 1 : index
    %c0_6 = arith.constant 0 : index
    %c0_7 = arith.constant 0 : index
    %28 = vector.load %arg4[%c1_5, %c0_6, %c0_7] : memref<2x4x32xf32, #tpu.memory_space<vmem>>, vector<1x4x32xf32>
    %29 = vector.shape_cast %28 : vector<1x4x32xf32> to vector<4x32xf32>
    %30 = tpu.concatenate %27, %29 in 1 : vector<4x32xf32>, vector<4x32xf32> -> vector<4x64xf32>
    %c0_8 = arith.constant 0 : index
    %c0_9 = arith.constant 0 : index
    %c0_10 = arith.constant 0 : index
    %31 = vector.load %arg5[%c0_8, %c0_9, %c0_10] : memref<2x4x32xf32, #tpu.memory_space<vmem>>, vector<1x4x32xf32>
    %32 = vector.shape_cast %31 : vector<1x4x32xf32> to vector<4x32xf32>
    %c1_11 = arith.constant 1 : index
    %c0_12 = arith.constant 0 : index
    %c0_13 = arith.constant 0 : index
    %33 = vector.load %arg5[%c1_11, %c0_12, %c0_13] : memref<2x4x32xf32, #tpu.memory_space<vmem>>, vector<1x4x32xf32>
    %34 = vector.shape_cast %33 : vector<1x4x32xf32> to vector<4x32xf32>
    %35 = tpu.concatenate %32, %34 in 1 : vector<4x32xf32>, vector<4x32xf32> -> vector<4x64xf32>
    %c0_14 = arith.constant 0 : index
    %c0_15 = arith.constant 0 : index
    %36 = vector.load %arg2[%c0_14, %c0_15] : memref<128x256xbf16, #tpu.memory_space<vmem>>, vector<128x256xbf16>
    %c0_16 = arith.constant 0 : index
    %c0_17 = arith.constant 0 : index
    %37 = vector.load %arg3[%c0_16, %c0_17] : memref<1x256xf32, #tpu.memory_space<vmem>>, vector<1x256xf32>
    %38 = tpu.iota {dimensions = array<i32: 1>} : vector<4x256xi32>
    %c128_i32 = arith.constant 128 : i32
    %39 = vector.broadcast %c128_i32 : i32 to vector<4x256xi32>
    %40 = arith.cmpi sge, %38, %39 : vector<4x256xi32>
    %c192_i32 = arith.constant 192 : i32
    %41 = vector.broadcast %c192_i32 : i32 to vector<4x256xi32>
    %42 = arith.cmpi slt, %38, %41 : vector<4x256xi32>
    %43 = arith.andi %40, %42 : vector<4x256xi1>
    %44 = arith.truncf %30 : vector<4x64xf32> to vector<4x64xbf16>
    %45 = tpu.concatenate %25, %25, %44 in 1 : vector<4x32xbf16>, vector<4x32xbf16>, vector<4x64xbf16> -> vector<4x128xbf16>
    %cst_18 = arith.constant dense<0.000000e+00> : vector<4x256xf32>
    %46 = tpu.matmul %45, %36, %cst_18 {dimension_numbers = #tpu.dot_dimension_numbers<[1], [0], [0], [1], [0, 0, 1, 1], [], []>} : vector<4x128xbf16>, vector<128x256xbf16>, vector<4x256xf32> -> vector<4x256xf32>
    %47 = vector.broadcast %37 : vector<1x256xf32> to vector<4x256xf32>
    %48 = arith.addf %46, %47 : vector<4x256xf32>
    %49 = math.tanh %48 : vector<4x256xf32>
    %50 = arith.negf %48 : vector<4x256xf32>
    %51 = math.exp %50 : vector<4x256xf32>
    %cst_19 = arith.constant 1.000000e+00 : f32
    %52 = vector.broadcast %cst_19 : f32 to vector<4x256xf32>
    %53 = arith.addf %52, %51 : vector<4x256xf32>
    %54 = arith.divf %52, %53 : vector<4x256xf32>
    %55 = arith.select %43, %49, %54 : vector<4x256xi1>, vector<4x256xf32>
    %56 = vector.extract_strided_slice %55 {offsets = [0, 0], sizes = [4, 64], strides = [1, 1]} : vector<4x256xf32> to vector<4x64xf32>
    %57 = vector.extract_strided_slice %55 {offsets = [0, 64], sizes = [4, 64], strides = [1, 1]} : vector<4x256xf32> to vector<4x64xf32>
    %58 = vector.extract_strided_slice %55 {offsets = [0, 128], sizes = [4, 64], strides = [1, 1]} : vector<4x256xf32> to vector<4x64xf32>
    %59 = vector.extract_strided_slice %55 {offsets = [0, 192], sizes = [4, 64], strides = [1, 1]} : vector<4x256xf32> to vector<4x64xf32>
    %60 = arith.mulf %57, %35 : vector<4x64xf32>
    %61 = arith.mulf %56, %58 : vector<4x64xf32>
    %62 = arith.addf %60, %61 : vector<4x64xf32>
    %63 = math.tanh %62 : vector<4x64xf32>
    %64 = arith.mulf %59, %63 : vector<4x64xf32>
    %65 = vector.extract_strided_slice %64 {offsets = [0, 0], sizes = [4, 32], strides = [1, 1]} : vector<4x64xf32> to vector<4x32xf32>
    %c0_20 = arith.constant 0 : index
    %c0_21 = arith.constant 0 : index
    %c0_22 = arith.constant 0 : index
    %66 = vector.load %arg14[%c0_20, %c0_21, %c0_22] : memref<2x4x32xf32, #tpu.memory_space<vmem>>, vector<1x4x32xf32>
    %67 = vector.shape_cast %66 : vector<1x4x32xf32> to vector<4x32xf32>
    %68 = vector.shape_cast %65 : vector<4x32xf32> to vector<1x4x32xf32>
    tpu.vector_store %arg14[%c0_20, %c0_21, %c0_22], %68 {strides = array<i32>} : memref<2x4x32xf32, #tpu.memory_space<vmem>>, vector<1x4x32xf32>,
    %69 = vector.extract_strided_slice %64 {offsets = [0, 32], sizes = [4, 32], strides = [1, 1]} : vector<4x64xf32> to vector<4x32xf32>
    %c1_23 = arith.constant 1 : index
    %c0_24 = arith.constant 0 : index
    %c0_25 = arith.constant 0 : index
    %70 = vector.load %arg14[%c1_23, %c0_24, %c0_25] : memref<2x4x32xf32, #tpu.memory_space<vmem>>, vector<1x4x32xf32>
    %71 = vector.shape_cast %70 : vector<1x4x32xf32> to vector<4x32xf32>
    %72 = vector.shape_cast %69 : vector<4x32xf32> to vector<1x4x32xf32>
    tpu.vector_store %arg14[%c1_23, %c0_24, %c0_25], %72 {strides = array<i32>} : memref<2x4x32xf32, #tpu.memory_space<vmem>>, vector<1x4x32xf32>,
    %73 = vector.extract_strided_slice %62 {offsets = [0, 0], sizes = [4, 32], strides = [1, 1]} : vector<4x64xf32> to vector<4x32xf32>
    %c0_26 = arith.constant 0 : index
    %c0_27 = arith.constant 0 : index
    %c0_28 = arith.constant 0 : index
    %74 = vector.load %arg15[%c0_26, %c0_27, %c0_28] : memref<2x4x32xf32, #tpu.memory_space<vmem>>, vector<1x4x32xf32>
    %75 = vector.shape_cast %74 : vector<1x4x32xf32> to vector<4x32xf32>
    %76 = vector.shape_cast %73 : vector<4x32xf32> to vector<1x4x32xf32>
    tpu.vector_store %arg15[%c0_26, %c0_27, %c0_28], %76 {strides = array<i32>} : memref<2x4x32xf32, #tpu.memory_space<vmem>>, vector<1x4x32xf32>,
    %77 = vector.extract_strided_slice %62 {offsets = [0, 32], sizes = [4, 32], strides = [1, 1]} : vector<4x64xf32> to vector<4x32xf32>
    %c1_29 = arith.constant 1 : index
    %c0_30 = arith.constant 0 : index
    %c0_31 = arith.constant 0 : index
    %78 = vector.load %arg15[%c1_29, %c0_30, %c0_31] : memref<2x4x32xf32, #tpu.memory_space<vmem>>, vector<1x4x32xf32>
    %79 = vector.shape_cast %78 : vector<1x4x32xf32> to vector<4x32xf32>
    %80 = vector.shape_cast %77 : vector<4x32xf32> to vector<1x4x32xf32>
    tpu.vector_store %arg15[%c1_29, %c0_30, %c0_31], %80 {strides = array<i32>} : memref<2x4x32xf32, #tpu.memory_space<vmem>>, vector<1x4x32xf32>,
    %81 = arith.truncf %64 : vector<4x64xf32> to vector<4x64xbf16>
    %c0_32 = arith.constant 0 : index
    %c0_33 = arith.constant 0 : index
    %82 = vector.load %arg6[%c0_32, %c0_33] : memref<32x64xf32, #tpu.memory_space<vmem>>, vector<32x64xf32>
    %83 = arith.truncf %82 : vector<32x64xf32> to vector<32x64xbf16>
    %c0_34 = arith.constant 0 : index
    %c0_35 = arith.constant 0 : index
    %84 = vector.load %arg7[%c0_34, %c0_35] : memref<64x64xbf16, #tpu.memory_space<vmem>>, vector<64x64xbf16>
    %cst_36 = arith.constant dense<0.000000e+00> : vector<32x64xf32>
    %85 = tpu.matmul %83, %84, %cst_36 {dimension_numbers = #tpu.dot_dimension_numbers<[1], [0], [0], [1], [0, 0, 1, 1], [], []>} : vector<32x64xbf16>, vector<64x64xbf16>, vector<32x64xf32> -> vector<32x64xf32>
    %c0_37 = arith.constant 0 : index
    %c0_38 = arith.constant 0 : index
    %86 = vector.load %arg8[%c0_37, %c0_38] : memref<1x64xf32, #tpu.memory_space<vmem>>, vector<1x64xf32>
    %87 = vector.broadcast %86 : vector<1x64xf32> to vector<32x64xf32>
    %88 = arith.addf %85, %87 : vector<32x64xf32>
    %89 = arith.truncf %88 : vector<32x64xf32> to vector<32x64xbf16>
    %cst_39 = arith.constant dense<0.000000e+00> : vector<4x32xf32>
    %90 = tpu.matmul %81, %89, %cst_39 {dimension_numbers = #tpu.dot_dimension_numbers<[1], [1], [0], [0], [0, 0, 1, 0], [], []>} : vector<4x64xbf16>, vector<32x64xbf16>, vector<4x32xf32> -> vector<4x32xf32>
    %91 = tpu.iota {dimensions = array<i32: 0>} : vector<4x32xi32>
    %92 = tpu.iota {dimensions = array<i32: 1>} : vector<4x32xi32>
    %c4_i32 = arith.constant 4 : i32
    %c0_i32 = arith.constant 0 : i32
    %93 = arith.cmpi eq, %c4_i32, %c0_i32 : i32
    %c1_i32 = arith.constant 1 : i32
    %94 = arith.select %93, %c1_i32, %c4_i32 : i32
    %95 = vector.broadcast %94 : i32 to vector<4x32xi32>
    %96 = arith.remsi %92, %95 : vector<4x32xi32>
    %c0_i32_40 = arith.constant 0 : i32
    %97 = vector.broadcast %c0_i32_40 : i32 to vector<4x32xi32>
    %98 = arith.cmpi ne, %96, %97 : vector<4x32xi32>
    %c0_i32_41 = arith.constant 0 : i32
    %99 = vector.broadcast %c0_i32_41 : i32 to vector<4x32xi32>
    %100 = arith.cmpi slt, %96, %99 : vector<4x32xi32>
    %c0_i32_42 = arith.constant 0 : i32
    %101 = arith.cmpi slt, %94, %c0_i32_42 : i32
    %102 = vector.broadcast %101 : i1 to vector<4x32xi1>
    %103 = vector.broadcast %102 : vector<4x32xi1> to vector<4x32xi1>
    %104 = arith.xori %100, %103 : vector<4x32xi1>
    %105 = arith.andi %104, %98 : vector<4x32xi1>
    %106 = vector.broadcast %94 : i32 to vector<4x32xi32>
    %107 = arith.addi %96, %106 : vector<4x32xi32>
    %108 = arith.select %105, %107, %96 : vector<4x32xi1>, vector<4x32xi32>
    %109 = arith.cmpi eq, %108, %91 : vector<4x32xi32>
    %cst_43 = arith.constant -1.000000e+30 : f32
    %110 = vector.broadcast %cst_43 : f32 to vector<4x32xf32>
    %111 = arith.select %109, %90, %110 : vector<4x32xi1>, vector<4x32xf32>
    %cst_44 = arith.constant dense<0xFF800000> : vector<4xf32>
    %112 = vector.multi_reduction <maximumf>, %111, %cst_44 [1] : vector<4x32xf32> to vector<4xf32>
    %113 = vector.shape_cast %112 : vector<4xf32> to vector<4x1xf32>
    %114 = vector.broadcast %113 : vector<4x1xf32> to vector<4x32xf32>
    %115 = arith.subf %111, %114 : vector<4x32xf32>
    %116 = math.exp %115 : vector<4x32xf32>
    %cst_45 = arith.constant dense<0.000000e+00> : vector<4xf32>
    %117 = vector.multi_reduction <add>, %116, %cst_45 [1] : vector<4x32xf32> to vector<4xf32>
    %118 = vector.shape_cast %117 : vector<4xf32> to vector<4x1xf32>
    %119 = tpu.reciprocal %118 {approx = true} : vector<4x1xf32> -> vector<4x1xf32>
    %120 = vector.broadcast %119 : vector<4x1xf32> to vector<4x32xf32>
    %121 = arith.mulf %116, %120 : vector<4x32xf32>
    %122 = arith.truncf %121 : vector<4x32xf32> to vector<4x32xbf16>
    %cst_46 = arith.constant dense<0.000000e+00> : vector<4x64xf32>
    %123 = tpu.matmul %122, %83, %cst_46 {dimension_numbers = #tpu.dot_dimension_numbers<[1], [0], [0], [1], [0, 0, 1, 1], [], []>} : vector<4x32xbf16>, vector<32x64xbf16>, vector<4x64xf32> -> vector<4x64xf32>
    %124 = arith.truncf %123 : vector<4x64xf32> to vector<4x64xbf16>
    %125 = tpu.concatenate %124, %81 in 1 : vector<4x64xbf16>, vector<4x64xbf16> -> vector<4x128xbf16>
    %c0_47 = arith.constant 0 : index
    %c0_48 = arith.constant 0 : index
    %126 = vector.load %arg9[%c0_47, %c0_48] : memref<128x32xbf16, #tpu.memory_space<vmem>>, vector<128x32xbf16>
    %cst_49 = arith.constant dense<0.000000e+00> : vector<4x32xf32>
    %127 = tpu.matmul %125, %126, %cst_49 {dimension_numbers = #tpu.dot_dimension_numbers<[1], [0], [0], [1], [0, 0, 1, 1], [], []>} : vector<4x128xbf16>, vector<128x32xbf16>, vector<4x32xf32> -> vector<4x32xf32>
    %c0_50 = arith.constant 0 : index
    %c0_51 = arith.constant 0 : index
    %128 = vector.load %arg10[%c0_50, %c0_51] : memref<1x32xf32, #tpu.memory_space<vmem>>, vector<1x32xf32>
    %129 = vector.broadcast %128 : vector<1x32xf32> to vector<4x32xf32>
    %130 = arith.addf %127, %129 : vector<4x32xf32>
    %131 = math.tanh %130 : vector<4x32xf32>
    %132 = arith.truncf %131 : vector<4x32xf32> to vector<4x32xbf16>
    %c0_52 = arith.constant 0 : index
    %c0_53 = arith.constant 0 : index
    %133 = vector.load %arg11[%c0_52, %c0_53] : memref<32x48xbf16, #tpu.memory_space<vmem>>, vector<32x48xbf16>
    %cst_54 = arith.constant dense<0.000000e+00> : vector<4x48xf32>
    %134 = tpu.matmul %132, %133, %cst_54 {dimension_numbers = #tpu.dot_dimension_numbers<[1], [0], [0], [1], [0, 0, 1, 1], [], []>} : vector<4x32xbf16>, vector<32x48xbf16>, vector<4x48xf32> -> vector<4x48xf32>
    %c0_55 = arith.constant 0 : index
    %c0_56 = arith.constant 0 : index
    %135 = vector.load %arg12[%c0_55, %c0_56] : memref<1x48xf32, #tpu.memory_space<vmem>>, vector<1x48xf32>
    %136 = vector.broadcast %135 : vector<1x48xf32> to vector<4x48xf32>
    %137 = arith.addf %134, %136 : vector<4x48xf32>
    %cst_57 = arith.constant dense<0xFF800000> : vector<4xf32>
    %138 = vector.multi_reduction <maximumf>, %137, %cst_57 [1] : vector<4x48xf32> to vector<4xf32>
    %139 = vector.shape_cast %138 : vector<4xf32> to vector<4x1xf32>
    %140 = vector.broadcast %139 : vector<4x1xf32> to vector<4x48xf32>
    %141 = arith.subf %137, %140 : vector<4x48xf32>
    %142 = math.exp %141 : vector<4x48xf32>
    %cst_58 = arith.constant dense<0.000000e+00> : vector<4xf32>
    %143 = vector.multi_reduction <add>, %142, %cst_58 [1] : vector<4x48xf32> to vector<4xf32>
    %144 = vector.shape_cast %143 : vector<4xf32> to vector<4x1xf32>
    %145 = math.log %144 : vector<4x1xf32>
    %146 = vector.broadcast %145 : vector<4x1xf32> to vector<4x48xf32>
    %147 = arith.subf %141, %146 : vector<4x48xf32>
    %c0_59 = arith.constant 0 : index
    %c0_60 = arith.constant 0 : index
    %148 = vector.load %arg13[%c0_59, %c0_60] : memref<4x48xf32, #tpu.memory_space<vmem>>, vector<4x48xf32>
    tpu.vector_store %arg13[%c0_59, %c0_60], %147 {strides = array<i32>} : memref<4x48xf32, #tpu.memory_space<vmem>>, vector<4x48xf32>,
    return
  }
}

</mosaic_0001>

<llo_original>
// kernel: decoder_forward.1
$region0: #{decoder_forward.1}
  #allocation0 [shape = 'u32[]', space=smem, size = 0x4, offset = 0x4, fixed_abs, tag = 'smem constant byte address 0x4 - core index']
  #allocation1 [shape = 'u32[72,128]{1,0:T(1,128)}', space=vmem, size = 0x9000, scoped, tag = 'internal scratch']
  %s0 = inlined_call_operand.vmem [shape: s32[4], index: 0, kind: input, shape index: {}]
  %s1 = inlined_call_operand.vmem [shape: bf16[48,32], index: 1, kind: input, shape index: {}]
  %s2 = inlined_call_operand.hbm [shape: bf16[128,256], index: 2, kind: input, shape index: {}]
  %s3 = inlined_call_operand.vmem [shape: f32[1,256], index: 3, kind: input, shape index: {}]
  %s4 = inlined_call_operand.vmem [shape: f32[2,4,32], index: 4, kind: input, shape index: {}]
  %s5 = inlined_call_operand.vmem [shape: f32[2,4,32], index: 5, kind: input, shape index: {}]
  %s6 = inlined_call_operand.vmem [shape: f32[32,64], index: 6, kind: input, shape index: {}]
  %s7 = inlined_call_operand.vmem [shape: bf16[64,64], index: 7, kind: input, shape index: {}]
  %s8 = inlined_call_operand.vmem [shape: f32[1,64], index: 8, kind: input, shape index: {}]
  %s9 = inlined_call_operand.vmem [shape: bf16[128,32], index: 9, kind: input, shape index: {}]
  %s10 = inlined_call_operand.vmem [shape: f32[1,32], index: 10, kind: input, shape index: {}]
  %s11 = inlined_call_operand.vmem [shape: bf16[32,48], index: 11, kind: input, shape index: {}]
  %s12 = inlined_call_operand.vmem [shape: f32[1,48], index: 12, kind: input, shape index: {}]
  %s13 = inlined_call_operand.hbm [shape: f32[4,48], index: 13, kind: output, shape index: {0}]
  %s14 = inlined_call_operand.hbm [shape: f32[2,4,32], index: 14, kind: output, shape index: {1}]
  %s15 = inlined_call_operand.hbm [shape: f32[2,4,32], index: 15, kind: output, shape index: {2}]
  %16 = xla_tuple %s13, %s14, %s15
  %s17 = sld [smem:[#allocation0]]
  $region86: #{decoder_forward.1} parent=0
    _
  %s19 = ssub.s32 1, %s17
  %s20 = scalar_select 0, %s19, %s17
  $region1: #{decoder_forward.1} parent=0
    #allocation2 [shape = 'u8[512]{0}', space=smem, size = 0x200, scoped, tag = 'input window, operand 0, single buffered']
    #allocation3 [shape = 's32[1]{0}', space=sflag, size = 0x4, scoped, tag = 'scoped memory for decoder_forward.1']
    #allocation4 [shape = 's32[1]{0}', space=sflag, size = 0x4, scoped, tag = 'scoped memory for decoder_forward.1']
    #allocation5 [shape = 's32[1]{0}', space=sflag, size = 0x4, scoped, tag = 'scoped memory for decoder_forward.1']
    #allocation6 [shape = 'u8[65536]{0}', space=vmem, size = 0x10000, scoped, tag = 'input window, operand 2, single buffered']
    #allocation7 [shape = 'u8[2048]{0}', space=vmem, size = 0x800, scoped, tag = 'output window, operand 0, single buffered']
    #allocation8 [shape = 'u8[4096]{0}', space=vmem, size = 0x1000, scoped, tag = 'output window, operand 1, single buffered']
    #allocation9 [shape = 's32[1]{0}', space=sflag, size = 0x4, scoped, tag = 'scoped memory for decoder_forward.1']
    #allocation10 [shape = 'u8[4096]{0}', space=vmem, size = 0x1000, scoped, tag = 'output window, operand 2, single buffered']
    %21 = vsyncpa [#allocation5], 0
    %22 = vsyncpa [#allocation3], 0
    %23 = vsyncpa [#allocation4], 0
    %24 = vsyncpa [#allocation9], 0
    // Predicated region
    $region2: #{decoder_forward.1} parent=1 // pred_check
      _
    $region3: #{decoder_forward.1} parent=1 // pred_check_branch
      %26 = sbr.rel (0) target = $region5
    $region4: #{decoder_forward.1} parent=1 // pred_region
      %28 = vsyncadd [#allocation5], 0
      %s30 = sshll.u32 %s0, 4
      %s31 = int_to_ptr.vmem [resolvable:$true] %s30
      %33 = dma.vmem_to_smem %s31, 16, [#allocation2], [#allocation5]
    $region5: #{decoder_forward.1} parent=1 // pred_fallthru
      _
    // Predicated region
    $region6: #{decoder_forward.1} parent=1 // pred_check
      _
    $region7: #{decoder_forward.1} parent=1 // pred_check_branch
      %35 = sbr.rel (0) target = $region9
    $region8: #{decoder_forward.1} parent=1 // pred_region
      _
    $region9: #{decoder_forward.1} parent=1 // pred_fallthru
      _
    // Predicated region
    $region10: #{decoder_forward.1} parent=1 // pred_check
      _
    $region11: #{decoder_forward.1} parent=1 // pred_check_branch
      %37 = sbr.rel (0) target = $region13
    $region12: #{decoder_forward.1} parent=1 // pred_region
      %39 = vsyncadd [#allocation3], 0
      %s40 = sshll.u32 %s2, 4
      %s41 = int_to_ptr.hbm [resolvable:$true] %s40
      %s42 = sshll.u32 [#allocation6], 4
      %s43 = int_to_ptr.vmem [resolvable:$true] %s42
      %48 = dma.hbm_to_vmem [thread:$0]  %s41, 2048, %s43, [#allocation3], 128, 128, 8
    $region13: #{decoder_forward.1} parent=1 // pred_fallthru
      _
    // Predicated region
    $region14: #{decoder_forward.1} parent=1 // pred_check
      _
    $region15: #{decoder_forward.1} parent=1 // pred_check_branch
      %50 = sbr.rel (0) target = $region17
    $region16: #{decoder_forward.1} parent=1 // pred_region
      _
    $region17: #{decoder_forward.1} parent=1 // pred_fallthru
      _
    // Predicated region
    $region18: #{decoder_forward.1} parent=1 // pred_check
      _
    $region19: #{decoder_forward.1} parent=1 // pred_check_branch
      %52 = sbr.rel (0) target = $region21
    $region20: #{decoder_forward.1} parent=1 // pred_region
      _
    $region21: #{decoder_forward.1} parent=1 // pred_fallthru
      _
    // Predicated region
    $region22: #{decoder_forward.1} parent=1 // pred_check
      _
    $region23: #{decoder_forward.1} parent=1 // pred_check_branch
      %54 = sbr.rel (0) target = $region25
    $region24: #{decoder_forward.1} parent=1 // pred_region
      _
    $region25: #{decoder_forward.1} parent=1 // pred_fallthru
      _
    // Predicated region
    $region26: #{decoder_forward.1} parent=1 // pred_check
      _
    $region27: #{decoder_forward.1} parent=1 // pred_check_branch
      %56 = sbr.rel (0) target = $region29
    $region28: #{decoder_forward.1} parent=1 // pred_region
      _
    $region29: #{decoder_forward.1} parent=1 // pred_fallthru
      _
    // Predicated region
    $region30: #{decoder_forward.1} parent=1 // pred_check
      _
    $region31: #{decoder_forward.1} parent=1 // pred_check_branch
      %58 = sbr.rel (0) target = $region33
    $region32: #{decoder_forward.1} parent=1 // pred_region
      _
    $region33: #{decoder_forward.1} parent=1 // pred_fallthru
      _
    // Predicated region
    $region34: #{decoder_forward.1} parent=1 // pred_check
      _
    $region35: #{decoder_forward.1} parent=1 // pred_check_branch
      %60 = sbr.rel (0) target = $region37
    $region36: #{decoder_forward.1} parent=1 // pred_region
      _
    $region37: #{decoder_forward.1} parent=1 // pred_fallthru
      _
    // Predicated region
    $region38: #{decoder_forward.1} parent=1 // pred_check
      _
    $region39: #{decoder_forward.1} parent=1 // pred_check_branch
      %62 = sbr.rel (0) target = $region41
    $region40: #{decoder_forward.1} parent=1 // pred_region
      _
    $region41: #{decoder_forward.1} parent=1 // pred_fallthru
      _
    // Predicated region
    $region42: #{decoder_forward.1} parent=1 // pred_check
      _
    $region43: #{decoder_forward.1} parent=1 // pred_check_branch
      %64 = sbr.rel (0) target = $region45
    $region44: #{decoder_forward.1} parent=1 // pred_region
      _
    $region45: #{decoder_forward.1} parent=1 // pred_fallthru
      _
    // Predicated region
    $region46: #{decoder_forward.1} parent=1 // pred_check
      _
    $region47: #{decoder_forward.1} parent=1 // pred_check_branch
      %66 = sbr.rel (0) target = $region49
    $region48: #{decoder_forward.1} parent=1 // pred_region
      _
    $region49: #{decoder_forward.1} parent=1 // pred_fallthru
      _
    // Predicated region
    $region50: #{decoder_forward.1} parent=1 // pred_check
      _
    $region51: #{decoder_forward.1} parent=1 // pred_check_branch
      %68 = sbr.rel (0) target = $region53
    $region52: #{decoder_forward.1} parent=1 // pred_region
      _
    $region53: #{decoder_forward.1} parent=1 // pred_fallthru
      _
    // Predicated region
    $region54: #{decoder_forward.1} parent=1 // pred_check
      _
    $region55: #{decoder_forward.1} parent=1 // pred_check_branch
      %70 = sbr.rel (0) target = $region57
    $region56: #{decoder_forward.1} parent=1 // pred_region
      %72 = dma.done [#allocation5], 16
    $region57: #{decoder_forward.1} parent=1 // pred_fallthru
      _
    // Predicated region
    $region58: #{decoder_forward.1} parent=1 // pred_check
      _
    $region59: #{decoder_forward.1} parent=1 // pred_check_branch
      %74 = sbr.rel (0) target = $region61
    $region60: #{decoder_forward.1} parent=1 // pred_region
      %76 = dma.done [#allocation3], 2048
    $region61: #{decoder_forward.1} parent=1 // pred_fallthru
      _
    %77 = sfence
    %v79 = vlaneseq
    %v80 = vand.u32 %v79, 127
    %v81 = vld [vmem:[%s1] sm:$0xf]
    %v82 = vld [vmem:[%s1 + $0x4] sm:$0xf]
    %v83 = vld [vmem:[%s1 + $0x8] sm:$0xf]
    %v84 = vld [vmem:[%s1 + $0xc] sm:$0xf]
    %v85 = vld [vmem:[%s1 + $0x10] sm:$0xf]
    %v86 = vld [vmem:[%s1 + $0x14] sm:$0xf]
    %s87 = sld [smem:[#allocation2]]
    %v88 = vstv %s87
    %vm89 = vcmp.eq.s32.totalorder %v80, %v88
    %v90 = vsel %vm89, 1, 0
    %v91 = vcvt.s32.f32 %v90
    %s92 = sld [smem:[#allocation2 + $0x1]]
    %v93 = vstv %s92
    %vm94 = vcmp.eq.s32.totalorder %v80, %v93
    %v95 = vsel %vm94, 1, 0
    %v96 = vcvt.s32.f32 %v95
    %s97 = sld [smem:[#allocation2 + $0x2]]
    %v98 = vstv %s97
    %vm99 = vcmp.eq.s32.totalorder %v80, %v98
    %v100 = vsel %vm99, 1, 0
    %v101 = vcvt.s32.f32 %v100
    %s102 = sld [smem:[#allocation2 + $0x3]]
    %v103 = vstv %s102
    %vm104 = vcmp.eq.s32.totalorder %v80, %v103
    %v105 = vsel %vm104, 1, 0
    %v106 = vcvt.s32.f32 %v105
    %vm107 = vcmask 1040384
    %v108 = vsel %vm107, %v91, %v96
    %vm109 = vcmask 1041408
    %v110 = vsel %vm109, %v108, %v101
    %vm111 = vcmask 1042432
    %v112 = vsel %vm111, %v110, %v106
    %v113 = vpack.c.bf16 %v112, %v112
    %v120 = vunpack.c.l.b16 %v81
    %v121 = vunpack.c.l.b16 %v82
    %v122 = vunpack.c.l.b16 %v83
    %v123 = vunpack.c.l.b16 %v84
    %v124 = vunpack.c.l.b16 %v85
    %v125 = vunpack.c.l.b16 %v86
    %v126 = vpack.c.b16 %v121, %v120
    %v127 = vpack.c.b16 %v123, %v122
    %v128 = vpack.c.b16 %v125, %v124
    %vm132 = vcmask 392192
    %v134 = vsel %vm132, %v113, 0
    %136 = vmatpush.bf16.msra.mxu0 0
    %137 = vmatpush.bf16.msra.mxu0 0
    %138 = vmatpush.bf16.msra.mxu0 0
    %139 = vmatpush.bf16.msra.mxu0 0
    %140 = vmatpush.bf16.msra.mxu0 0
    %141 = vmatpush.bf16.msra.mxu0 %v128
    %142 = vmatpush.bf16.msra.mxu0 %v127
    %143 = vmatpush.bf16.msra.mxu0 %v126
    %144 = vmatmul.bf16.gmra.mxu0 %v134
    %v145 = vpop.f32.mrf.mxu0
    %v146 = vadd.f32 0.0, %v145
    %v147 = vpop.f32.mrf.mxu0
    %148 = vdwg.mxu0
    %v149 = vpack.c.bf16 %v146, %v146
    %v150 = vld [vmem:[%s4] sm:$0xf]
    %s151 = scalar_lea.vmem %s4, 4
    %v152 = vld [vmem:[%s151] sm:$0xf]
    %154 = vrot.lane.b32.xlu0 %v152, 32
    %v155 = vpop.permute.xlu0 %154
    %vm157 = vcmask 261120
    %v158 = vsel %vm157, %v150, %v155
    %v159 = vld [vmem:[%s5] sm:$0xf]
    %s160 = scalar_lea.vmem %s5, 4
    %v161 = vld [vmem:[%s160] sm:$0xf]
    %163 = vrot.lane.b32.xlu0 %v161, 32
    %v164 = vpop.permute.xlu0 %163
    %v166 = vsel %vm157, %v159, %v164
    %v167 = vld [vmem:[#allocation6] sm:$0xff]
    %v168 = vld [vmem:[#allocation6 + $0x8] sm:$0xff]
    %v169 = vld [vmem:[#allocation6 + $0x10] sm:$0xff]
    %v170 = vld [vmem:[#allocation6 + $0x18] sm:$0xff]
    %v171 = vld [vmem:[#allocation6 + $0x20] sm:$0xff]
    %v172 = vld [vmem:[#allocation6 + $0x28] sm:$0xff]
    %v173 = vld [vmem:[#allocation6 + $0x30] sm:$0xff]
    %v174 = vld [vmem:[#allocation6 + $0x38] sm:$0xff]
    %v175 = vld [vmem:[#allocation6 + $0x40] sm:$0xff]
    %v176 = vld [vmem:[#allocation6 + $0x48] sm:$0xff]
    %v177 = vld [vmem:[#allocation6 + $0x50] sm:$0xff]
    %v178 = vld [vmem:[#allocation6 + $0x58] sm:$0xff]
    %v179 = vld [vmem:[#allocation6 + $0x60] sm:$0xff]
    %v180 = vld [vmem:[#allocation6 + $0x68] sm:$0xff]
    %v181 = vld [vmem:[#allocation6 + $0x70] sm:$0xff]
    %v182 = vld [vmem:[#allocation6 + $0x78] sm:$0xff]
    %v183 = vld [vmem:[%s3] sm:$0x3]
    %v184 = vadd.s32 %v80, 128
    %vm185 = vcmp.ge.s32.totalorder %v80, 128
    %vm186 = vcmp.ge.s32.totalorder %v184, 128
    %vm187 = vcmp.lt.s32.totalorder %v80, 192
    %vm188 = vcmp.lt.s32.totalorder %v184, 192
    %vm189 = vmand %vm185, %vm187
    %vm190 = vmand %vm186, %vm188
    %v191 = vpack.c.bf16 %v158, %v158
    %v193 = vunpack.c.l.b16 %v149
    %v194 = vpack.c.b16 %v193, %v193
    %195 = vrot.lane.b32.xlu0 %v194, 32
    %v196 = vpop.permute.xlu0 %195
    %v198 = vunpack.c.l.b16 %v191
    %v199 = vpack.c.b16 %v198, %v198
    %200 = vrot.lane.b32.xlu0 %v199, 64
    %v201 = vpop.permute.xlu0 %200
    %v204 = vsel %vm157, %v149, %v196
    %vm205 = vcmask 523264
    %v207 = vsel %vm205, %v204, %v201
    %v210 = vperm.slane %v183, 0
    %v211 = vperm.slane %v183, 1
    %v230 = vunpack.c.l.b16 %v167
    %v231 = vunpack.c.h.b16 %v167
    %v232 = vunpack.c.l.b16 %v168
    %v233 = vunpack.c.h.b16 %v168
    %v234 = vunpack.c.l.b16 %v169
    %v235 = vunpack.c.h.b16 %v169
    %v236 = vunpack.c.l.b16 %v170
    %v237 = vunpack.c.h.b16 %v170
    %v238 = vunpack.c.l.b16 %v171
    %v239 = vunpack.c.h.b16 %v171
    %v240 = vunpack.c.l.b16 %v172
    %v241 = vunpack.c.h.b16 %v172
    %v242 = vunpack.c.l.b16 %v173
    %v243 = vunpack.c.h.b16 %v173
    %v244 = vunpack.c.l.b16 %v174
    %v245 = vunpack.c.h.b16 %v174
    %v246 = vunpack.c.l.b16 %v175
    %v247 = vunpack.c.h.b16 %v175
    %v248 = vunpack.c.l.b16 %v176
    %v249 = vunpack.c.h.b16 %v176
    %v250 = vunpack.c.l.b16 %v177
    %v251 = vunpack.c.h.b16 %v177
    %v252 = vunpack.c.l.b16 %v178
    %v253 = vunpack.c.h.b16 %v178
    %v254 = vunpack.c.l.b16 %v179
    %v255 = vunpack.c.h.b16 %v179
    %v256 = vunpack.c.l.b16 %v180
    %v257 = vunpack.c.h.b16 %v180
    %v258 = vunpack.c.l.b16 %v181
    %v259 = vunpack.c.h.b16 %v181
    %v260 = vunpack.c.l.b16 %v182
    %v261 = vunpack.c.h.b16 %v182
    %v262 = vpack.c.b16 %v232, %v230
    %v263 = vpack.c.b16 %v233, %v231
    %v264 = vpack.c.b16 %v236, %v234
    %v265 = vpack.c.b16 %v237, %v235
    %v266 = vpack.c.b16 %v240, %v238
    %v267 = vpack.c.b16 %v241, %v239
    %v268 = vpack.c.b16 %v244, %v242
    %v269 = vpack.c.b16 %v245, %v243
    %v270 = vpack.c.b16 %v248, %v246
    %v271 = vpack.c.b16 %v249, %v247
    %v272 = vpack.c.b16 %v252, %v250
    %v273 = vpack.c.b16 %v253, %v251
    %v274 = vpack.c.b16 %v256, %v254
    %v275 = vpack.c.b16 %v257, %v255
    %v276 = vpack.c.b16 %v260, %v258
    %v277 = vpack.c.b16 %v261, %v259
    %294 = vmatpush.bf16.msra.mxu0 %v276
    %295 = vmatpush.bf16.msra.mxu0 %v274
    %296 = vmatpush.bf16.msra.mxu0 %v272
    %297 = vmatpush.bf16.msra.mxu0 %v270
    %298 = vmatpush.bf16.msra.mxu0 %v268
    %299 = vmatpush.bf16.msra.mxu0 %v266
    %300 = vmatpush.bf16.msra.mxu0 %v264
    %301 = vmatpush.bf16.msra.mxu0 %v262
    %302 = vmatmul.bf16.gmra.mxu0 %v207
    %v303 = vpop.f32.mrf.mxu0
    %v304 = vadd.f32 %v210, %v303
    %v305 = vpop.f32.mrf.mxu0
    %306 = vdwg.mxu0
    %307 = vmatpush.bf16.msra.mxu0 %v277
    %308 = vmatpush.bf16.msra.mxu0 %v275
    %309 = vmatpush.bf16.msra.mxu0 %v273
    %310 = vmatpush.bf16.msra.mxu0 %v271
    %311 = vmatpush.bf16.msra.mxu0 %v269
    %312 = vmatpush.bf16.msra.mxu0 %v267
    %313 = vmatpush.bf16.msra.mxu0 %v265
    %314 = vmatpush.bf16.msra.mxu0 %v263
    %315 = vmatmul.bf16.gmra.mxu0 %v207
    %v316 = vpop.f32.mrf.mxu0
    %v317 = vadd.f32 %v211, %v316
    %v318 = vpop.f32.mrf.mxu0
    %319 = vdwg.mxu0
    %v320 = vtanh.pop %v304
    %v321 = vtanh.pop %v317
    %v322 = vxor.u32 %v304, 2147483648
    %v323 = vxor.u32 %v317, 2147483648
    %v324 = vmul.f32 %v322, 1.442695
    %v325 = vpow.pop %v324
    %v326 = vmul.f32 %v323, 1.442695
    %v327 = vpow.pop %v326
    %v328 = vadd.f32 %v325, 1.0
    %v329 = vadd.f32 %v327, 1.0
    %v330 = vrcp.pop %v328
    %v331 = vmul.f32 %v328, %v330
    %v332 = vsub.f32 1.0, %v331
    %v333 = vmul.f32 %v330, %v332
    %v334 = vadd.f32 %v330, %v333
    %vm335 = vweird.f32 %v328
    %vm336 = vweird.f32 %v330
    %vm337 = vmor %vm335, %vm336
    %v338 = vsel %vm337, %v330, %v334
    %v339 = vand.u32 2147483647, %v328
    %vm340 = vcmp.eq.f32.partialorder %v339, 8.507059e+37
    %v341 = vand.u32 %v328, 2147483648
    %v342 = vor.u32 1.1754944e-38, %v341
    %v343 = vsel %vm340, %v342, %v338
    %v344 = vmul.f32 1.0, %v343
    %v345 = vrcp.pop %v329
    %v346 = vmul.f32 %v329, %v345
    %v347 = vsub.f32 1.0, %v346
    %v348 = vmul.f32 %v345, %v347
    %v349 = vadd.f32 %v345, %v348
    %vm350 = vweird.f32 %v329
    %vm351 = vweird.f32 %v345
    %vm352 = vmor %vm350, %vm351
    %v353 = vsel %vm352, %v345, %v349
    %v354 = vand.u32 2147483647, %v329
    %vm355 = vcmp.eq.f32.partialorder %v354, 8.507059e+37
    %v356 = vand.u32 %v329, 2147483648
    %v357 = vor.u32 1.1754944e-38, %v356
    %v358 = vsel %vm355, %v357, %v353
    %v359 = vmul.f32 1.0, %v358
    %v360 = vsel %vm189, %v320, %v344
    %v361 = vsel %vm190, %v321, %v359
    %363 = vrot.lane.b32.xlu0 %v166, 64
    %v364 = vpop.permute.xlu0 %363
    %v366 = vmul.f32 %v360, %v364
    %v367 = vmul.f32 %v360, %v361
    %369 = vrot.lane.b32.xlu0 %v367, 64
    %v370 = vpop.permute.xlu0 %369
    %v372 = vadd.f32 %v366, %v370
    %v373 = vtanh.pop %v372
    %v374 = vmul.f32 %v361, %v373
    %376 = vrot.lane.b32.xlu0 %v374, 64
    %v377 = vpop.permute.xlu0 %376
    %vm379 = vcmask 257024
    %380 = vst.msk [vmem:[#allocation8] sm:$0xf] %vm379, %v377
    %381 = vrot.lane.b32.xlu0 %v374, 32
    %v382 = vpop.permute.xlu0 %381
    %s384 = scalar_lea.vmem [#allocation8], 4
    %385 = vst.msk [vmem:[%s384] sm:$0xf] %vm379, %v382
    %387 = vrot.lane.b32.xlu0 %v372, 64
    %v388 = vpop.permute.xlu0 %387
    %390 = vst.msk [vmem:[#allocation10] sm:$0xf] %vm379, %v388
    %391 = vrot.lane.b32.xlu0 %v372, 32
    %v392 = vpop.permute.xlu0 %391
    %s394 = scalar_lea.vmem [#allocation10], 4
    %395 = vst.msk [vmem:[%s394] sm:$0xf] %vm379, %v392
    %v396 = vpack.c.bf16 %v374, %v374
    %v397 = vld [vmem:[%s6] sm:$0xff]
    %v398 = vld [vmem:[%s6 + $0x8] sm:$0xff]
    %v399 = vld [vmem:[%s6 + $0x10] sm:$0xff]
    %v400 = vld [vmem:[%s6 + $0x18] sm:$0xff]
    %v401 = vpack.c.bf16 %v398, %v397
    %v402 = vpack.c.bf16 %v400, %v399
    %v403 = vld [vmem:[%s7] sm:$0xf]
    %v404 = vld [vmem:[%s7 + $0x4] sm:$0xf]
    %v405 = vld [vmem:[%s7 + $0x8] sm:$0xf]
    %v406 = vld [vmem:[%s7 + $0xc] sm:$0xf]
    %v407 = vld [vmem:[%s7 + $0x10] sm:$0xf]
    %v408 = vld [vmem:[%s7 + $0x14] sm:$0xf]
    %v409 = vld [vmem:[%s7 + $0x18] sm:$0xf]
    %v410 = vld [vmem:[%s7 + $0x1c] sm:$0xf]
    %v411 = vld [vmem:[%s8] sm:$0x1]
    %v413 = vperm.slane %v411, 0
    %v423 = vunpack.c.l.b16 %v403
    %v424 = vunpack.c.l.b16 %v404
    %v425 = vunpack.c.l.b16 %v405
    %v426 = vunpack.c.l.b16 %v406
    %v427 = vunpack.c.l.b16 %v407
    %v428 = vunpack.c.l.b16 %v408
    %v429 = vunpack.c.l.b16 %v409
    %v430 = vunpack.c.l.b16 %v410
    %v431 = vpack.c.b16 %v424, %v423
    %v432 = vpack.c.b16 %v426, %v425
    %v433 = vpack.c.b16 %v428, %v427
    %v434 = vpack.c.b16 %v430, %v429
    %v440 = vsel %vm205, %v401, 0
    %v443 = vsel %vm205, %v402, 0
    %445 = vmatpush.bf16.msra.mxu0 0
    %446 = vmatpush.bf16.msra.mxu0 0
    %447 = vmatpush.bf16.msra.mxu0 0
    %448 = vmatpush.bf16.msra.mxu0 0
    %449 = vmatpush.bf16.msra.mxu0 %v434
    %450 = vmatpush.bf16.msra.mxu0 %v433
    %451 = vmatpush.bf16.msra.mxu0 %v432
    %452 = vmatpush.bf16.msra.mxu0 %v431
    %453 = vmatmul.bf16.gmra.mxu0 %v440
    %v454 = vpop.f32.mrf.mxu0
    %v455 = vadd.f32 %v413, %v454
    %v456 = vpop.f32.mrf.mxu0
    %v457 = vadd.f32 %v413, %v456
    %458 = vmatmul.bf16.gmra.mxu0 %v443
    %v459 = vpop.f32.mrf.mxu0
    %v460 = vadd.f32 %v413, %v459
    %v461 = vpop.f32.mrf.mxu0
    %v462 = vadd.f32 %v413, %v461
    %463 = vdwg.mxu0
    %v464 = vpack.c.bf16 %v457, %v455
    %v465 = vpack.c.bf16 %v462, %v460
    %v467 = vunpack.c.l.b16 %v396
    %v468 = vpack.c.b16 %v467, %v467
    %469 = vrot.lane.b32.xlu0 %v468, 64
    %v470 = vpop.permute.xlu0 %469
    %v472 = vsel %vm205, %v470, 0
    %v475 = vsel %vm205, %v464, 0
    %v478 = vsel %vm205, %v465, 0
    %480 = vmatpush.bf16.xpose.msra.mxu0 0
    %481 = vmatpush.bf16.xpose.msra.mxu0 0
    %482 = vmatpush.bf16.xpose.msra.mxu0 0
    %483 = vmatpush.bf16.xpose.msra.mxu0 0
    %484 = vmatpush.bf16.xpose.msra.mxu0 0
    %485 = vmatpush.bf16.xpose.msra.mxu0 0
    %486 = vmatpush.bf16.xpose.msra.mxu0 %v478
    %487 = vmatpush.bf16.xpose.msra.mxu0 %v475
    %488 = vmatmul.bf16.gmra.mxu0 %v472
    %v489 = vpop.f32.mrf.mxu0
    %v490 = vadd.f32 0.0, %v489
    %v491 = vpop.f32.mrf.mxu0
    %492 = vdwg.mxu0
    %v493 = vlaneseq
    %v494 = vshrl.u32 %v493, 7
    %vm495 = vcmp.lt.s32.totalorder %v80, 0
    %v496 = vsub.s32 0, %v80
    %v497 = vsel %vm495, %v496, %v80
    %v498 = vshrl.u32 %v497, 2
    %v499 = vand.u32 %v497, 3
    %v500 = vsub.s32 0, %v499
    %v501 = vsel %vm495, %v500, %v499
    %vm502 = vcmp.ne.s32.totalorder %v501, 0
    %vm503 = vcmp.lt.s32.totalorder %v501, 0
    %vm504 = vmand %vm503, %vm502
    %v505 = vadd.s32 %v501, 4
    %v506 = vsel %vm504, %v505, %v501
    %vm507 = vcmp.eq.s32.totalorder %v506, %v494
    %v508 = vsel %vm507, %v490, -1e+30
    %v509 = vsel %vm379, %v508, -inf
    %510 = vmax.xlane.f32.xlu0 %v509
    %v511 = vpop.xlane.xlu0 %510
    %v512 = vsub.f32 %v508, %v511
    %v513 = vmul.f32 %v512, 1.442695
    %v514 = vpow.pop %v513
    %v515 = vsel %vm379, %v514, 0.0
    %516 = vadd.xlane.f32.xlu0 %v515
    %v517 = vpop.xlane.xlu0 %516
    %v518 = vrcp.pop %v517
    %v519 = vmul.f32 %v514, %v518
    %v520 = vpack.c.bf16 %v519, %v519
    %v522 = vsel %vm157, %v520, 0
    %524 = vmatpush.bf16.msra.mxu0 0
    %525 = vmatpush.bf16.msra.mxu0 0
    %526 = vmatpush.bf16.msra.mxu0 0
    %527 = vmatpush.bf16.msra.mxu0 0
    %528 = vmatpush.bf16.msra.mxu0 0
    %529 = vmatpush.bf16.msra.mxu0 0
    %530 = vmatpush.bf16.msra.mxu0 %v402
    %531 = vmatpush.bf16.msra.mxu0 %v401
    %532 = vmatmul.bf16.gmra.mxu0 %v522
    %v533 = vpop.f32.mrf.mxu0
    %v534 = vadd.f32 0.0, %v533
    %v535 = vpop.f32.mrf.mxu0
    %536 = vdwg.mxu0
    %v537 = vpack.c.bf16 %v534, %v534
    %v540 = vsel %vm205, %v537, %v396
    %v542 = vld [vmem:[%s9] sm:$0xf]
    %v543 = vld [vmem:[%s9 + $0x4] sm:$0xf]
    %v544 = vld [vmem:[%s9 + $0x8] sm:$0xf]
    %v545 = vld [vmem:[%s9 + $0xc] sm:$0xf]
    %v546 = vld [vmem:[%s9 + $0x10] sm:$0xf]
    %v547 = vld [vmem:[%s9 + $0x14] sm:$0xf]
    %v548 = vld [vmem:[%s9 + $0x18] sm:$0xf]
    %v549 = vld [vmem:[%s9 + $0x1c] sm:$0xf]
    %v550 = vld [vmem:[%s9 + $0x20] sm:$0xf]
    %v551 = vld [vmem:[%s9 + $0x24] sm:$0xf]
    %v552 = vld [vmem:[%s9 + $0x28] sm:$0xf]
    %v553 = vld [vmem:[%s9 + $0x2c] sm:$0xf]
    %v554 = vld [vmem:[%s9 + $0x30] sm:$0xf]
    %v555 = vld [vmem:[%s9 + $0x34] sm:$0xf]
    %v556 = vld [vmem:[%s9 + $0x38] sm:$0xf]
    %v557 = vld [vmem:[%s9 + $0x3c] sm:$0xf]
    %v558 = vld [vmem:[%s10] sm:$0x1]
    %v560 = vperm.slane %v558, 0
    %v578 = vunpack.c.l.b16 %v542
    %v579 = vunpack.c.l.b16 %v543
    %v580 = vunpack.c.l.b16 %v544
    %v581 = vunpack.c.l.b16 %v545
    %v582 = vunpack.c.l.b16 %v546
    %v583 = vunpack.c.l.b16 %v547
    %v584 = vunpack.c.l.b16 %v548
    %v585 = vunpack.c.l.b16 %v549
    %v586 = vunpack.c.l.b16 %v550
    %v587 = vunpack.c.l.b16 %v551
    %v588 = vunpack.c.l.b16 %v552
    %v589 = vunpack.c.l.b16 %v553
    %v590 = vunpack.c.l.b16 %v554
    %v591 = vunpack.c.l.b16 %v555
    %v592 = vunpack.c.l.b16 %v556
    %v593 = vunpack.c.l.b16 %v557
    %v594 = vpack.c.b16 %v579, %v578
    %v595 = vpack.c.b16 %v581, %v580
    %v596 = vpack.c.b16 %v583, %v582
    %v597 = vpack.c.b16 %v585, %v584
    %v598 = vpack.c.b16 %v587, %v586
    %v599 = vpack.c.b16 %v589, %v588
    %v600 = vpack.c.b16 %v591, %v590
    %v601 = vpack.c.b16 %v593, %v592
    %610 = vmatpush.bf16.msra.mxu0 %v601
    %611 = vmatpush.bf16.msra.mxu0 %v600
    %612 = vmatpush.bf16.msra.mxu0 %v599
    %613 = vmatpush.bf16.msra.mxu0 %v598
    %614 = vmatpush.bf16.msra.mxu0 %v597
    %615 = vmatpush.bf16.msra.mxu0 %v596
    %616 = vmatpush.bf16.msra.mxu0 %v595
    %617 = vmatpush.bf16.msra.mxu0 %v594
    %618 = vmatmul.bf16.gmra.mxu0 %v540
    %v619 = vpop.f32.mrf.mxu0
    %v620 = vadd.f32 %v560, %v619
    %v621 = vpop.f32.mrf.mxu0
    %622 = vdwg.mxu0
    %v623 = vtanh.pop %v620
    %v624 = vpack.c.bf16 %v623, %v623
    %v625 = vld [vmem:[%s11] sm:$0xf]
    %v626 = vld [vmem:[%s11 + $0x4] sm:$0xf]
    %v627 = vld [vmem:[%s11 + $0x8] sm:$0xf]
    %v628 = vld [vmem:[%s11 + $0xc] sm:$0xf]
    %v629 = vld [vmem:[%s12] sm:$0x1]
    %v631 = vperm.slane %v629, 0
    %v637 = vunpack.c.l.b16 %v625
    %v638 = vunpack.c.l.b16 %v626
    %v639 = vunpack.c.l.b16 %v627
    %v640 = vunpack.c.l.b16 %v628
    %v641 = vpack.c.b16 %v638, %v637
    %v642 = vpack.c.b16 %v640, %v639
    %v646 = vsel %vm157, %v624, 0
    %648 = vmatpush.bf16.msra.mxu0 0
    %649 = vmatpush.bf16.msra.mxu0 0
    %650 = vmatpush.bf16.msra.mxu0 0
    %651 = vmatpush.bf16.msra.mxu0 0
    %652 = vmatpush.bf16.msra.mxu0 0
    %653 = vmatpush.bf16.msra.mxu0 0
    %654 = vmatpush.bf16.msra.mxu0 %v642
    %655 = vmatpush.bf16.msra.mxu0 %v641
    %656 = vmatmul.bf16.gmra.mxu0 %v646
    %v657 = vpop.f32.mrf.mxu0
    %v658 = vadd.f32 %v631, %v657
    %v659 = vpop.f32.mrf.mxu0
    %660 = vdwg.mxu0
    %vm661 = vcmask 388096
    %v662 = vsel %vm661, %v658, -inf
    %663 = vmax.xlane.f32.xlu0 %v662
    %v664 = vpop.xlane.xlu0 %663
    %v665 = vsub.f32 %v658, %v664
    %v666 = vmul.f32 %v665, 1.442695
    %v667 = vpow.pop %v666
    %v668 = vsel %vm661, %v667, 0.0
    %669 = vadd.xlane.f32.xlu0 %v668
    %v670 = vpop.xlane.xlu0 %669
    %v671 = vlog2.pop %v670
    %v672 = vmul.f32 %v671, 0.6931472
    %v673 = vsub.f32 %v665, %v672
    %674 = vst.msk [vmem:[#allocation7] sm:$0xf] %vm661, %v673
    // Predicated region
    $region62: #{decoder_forward.1} parent=1 // pred_check
      _
    $region63: #{decoder_forward.1} parent=1 // pred_check_branch
      %676 = sbr.rel (0) target = $region65
    $region64: #{decoder_forward.1} parent=1 // pred_region
      %678 = vsyncadd [#allocation4], 0
      %s680 = sshll.u32 [#allocation7], 4
      %s681 = int_to_ptr.vmem [resolvable:$true] %s680
      %s682 = sshll.u32 %s13, 4
      %s683 = int_to_ptr.hbm [resolvable:$true] %s682
      %685 = dma.vmem_to_hbm [thread:$0]  %s681, 64, %s683, [#allocation4]
    $region65: #{decoder_forward.1} parent=1 // pred_fallthru
      _
    // Predicated region
    $region66: #{decoder_forward.1} parent=1 // pred_check
      _
    $region67: #{decoder_forward.1} parent=1 // pred_check_branch
      %687 = sbr.rel (0) target = $region69
    $region68: #{decoder_forward.1} parent=1 // pred_region
      %689 = vsyncadd [#allocation9], 0
      %s690 = sshll.u32 [#allocation8], 4
      %s691 = int_to_ptr.vmem [resolvable:$true] %s690
      %s692 = sshll.u32 %s14, 4
      %s693 = int_to_ptr.hbm [resolvable:$true] %s692
      %698 = dma.vmem_to_hbm [thread:$0]  %s691, 128, %s693, [#allocation9], 64, 64, 4
    $region69: #{decoder_forward.1} parent=1 // pred_fallthru
      _
    // Predicated region
    $region70: #{decoder_forward.1} parent=1 // pred_check
      _
    $region71: #{decoder_forward.1} parent=1 // pred_check_branch
      %700 = sbr.rel (0) target = $region73
    $region72: #{decoder_forward.1} parent=1 // pred_region
      %702 = vsyncadd [#allocation9], 0
      %s703 = sshll.u32 [#allocation10], 4
      %s704 = int_to_ptr.vmem [resolvable:$true] %s703
      %s705 = sshll.u32 %s15, 4
      %s706 = int_to_ptr.hbm [resolvable:$true] %s705
      %711 = dma.vmem_to_hbm [thread:$0]  %s704, 128, %s706, [#allocation9], 64, 64, 4
    $region73: #{decoder_forward.1} parent=1 // pred_fallthru
      _
    // Predicated region
    $region74: #{decoder_forward.1} parent=1 // pred_check
      _
    $region75: #{decoder_forward.1} parent=1 // pred_check_branch
      %713 = sbr.rel (0) target = $region77
    $region76: #{decoder_forward.1} parent=1 // pred_region
      %715 = dma.done [#allocation4], 64
    $region77: #{decoder_forward.1} parent=1 // pred_fallthru
      _
    // Predicated region
    $region78: #{decoder_forward.1} parent=1 // pred_check
      _
    $region79: #{decoder_forward.1} parent=1 // pred_check_branch
      %717 = sbr.rel (0) target = $region81
    $region80: #{decoder_forward.1} parent=1 // pred_region
      %719 = dma.done [#allocation9], 128
    $region81: #{decoder_forward.1} parent=1 // pred_fallthru
      _
    // Predicated region
    $region82: #{decoder_forward.1} parent=1 // pred_check
      _
    $region83: #{decoder_forward.1} parent=1 // pred_check_branch
      %721 = sbr.rel (0) target = $region85
    $region84: #{decoder_forward.1} parent=1 // pred_region
      %723 = dma.done [#allocation9], 128
    $region85: #{decoder_forward.1} parent=1 // pred_fallthru
      _
    %724 = vsyncpa [#allocation3], 1
    %725 = vsyncpa [#allocation4], 1
    %726 = vsyncpa [#allocation9], 1
    %727 = vsyncpa [#allocation5], 1

</llo_original>
